<compile_context>
chip_gen: v7x
topology: tpu7x:2x2x1
jax: 0.10.0
libtpu: 0.0.40
codegen_flags: <defaults>
</compile_context>

<pallas_src>
import math

import jax
import jax.numpy as jnp
from jax.experimental import pallas as pl
from jax.experimental.pallas import tpu as pltpu

_VMEM_LIMIT = 32 * 1024 * 1024   # explicit scoped-VMEM limit, safe on v5e/v6e/v7x
_MAX_TILE = 512                  # 512 is a multiple of both 8 (sublane) and 128 (lane)


def _tile(n: int, cap: int = _MAX_TILE) -> int:
    """Whole dim when small (block == full dim is always legal), else 512."""
    return n if n <= cap else cap


# ---------------------------------------------------------------------------
# Generic tiled GEMM with bias:  y = x @ w_t + b
# ---------------------------------------------------------------------------
def _matmul_bias_kernel(x_ref, wt_ref, b_ref, o_ref, acc_ref):
    @pl.when(pl.program_id(2) == 0)
    def _():
        acc_ref[...] = jnp.zeros_like(acc_ref)

    acc_ref[...] += jnp.dot(x_ref[...], wt_ref[...],
                            preferred_element_type=jnp.float32)

    @pl.when(pl.program_id(2) == pl.num_programs(2) - 1)
    def _():
        o_ref[...] = (acc_ref[...] + b_ref[...]).astype(o_ref.dtype)


def pallas_matmul_bias(x, w_t, b):
    """x: (N, K) f32; w_t: (K, M) (transposed ONCE in prepare_params); b: (1, M)."""
    N, K = x.shape
    M = w_t.shape[1]
    tm, tn, tk = _tile(N), _tile(M), _tile(K)
    if K > tk:
        # TODO(synk): ragged K tails would accumulate padding garbage; pad or mask in-kernel.
        assert K % tk == 0
    # TODO(synk): cast x / w_t to bf16 (keep f32 accumulation) for ~2x MXU and HBM
    # once the validation tolerance allows it.
    return pl.pallas_call(
        _matmul_bias_kernel,
        out_shape=jax.ShapeDtypeStruct((N, M), jnp.float32),
        grid=(pl.cdiv(N, tm), pl.cdiv(M, tn), pl.cdiv(K, tk)),
        in_specs=[
            pl.BlockSpec((tm, tk), lambda i, j, k: (i, k)),
            pl.BlockSpec((tk, tn), lambda i, j, k: (k, j)),
            pl.BlockSpec((1, tn), lambda i, j, k: (0, j)),
        ],
        out_specs=pl.BlockSpec((tm, tn), lambda i, j, k: (i, j)),
        scratch_shapes=[pltpu.VMEM((tm, tn), jnp.float32)],
        compiler_params=pltpu.CompilerParams(
            dimension_semantics=("parallel", "parallel", "arbitrary"),
            vmem_limit_bytes=_VMEM_LIMIT,
        ),
        cost_estimate=pl.CostEstimate(
            flops=2 * N * K * M,
            transcendentals=0,
            bytes_accessed=4 * (N * K + K * M + M + N * M),
        ),
    )(x, w_t, b)


# ---------------------------------------------------------------------------
# Flash-style attention: grid = (batch*heads, Sq tiles, Sk tiles)
# ---------------------------------------------------------------------------
def _flash_attn_step(q_ref, k_ref, v_ref, o_ref, m_sc, l_sc, acc_sc, neg_mask):
    ki = pl.program_id(2)

    @pl.when(ki == 0)
    def _():
        m_sc[...] = jnp.full_like(m_sc, -jnp.inf)
        l_sc[...] = jnp.zeros_like(l_sc)
        acc_sc[...] = jnp.zeros_like(acc_sc)

    # 1/sqrt(d_head) is folded into the Q projection weights (prepare_params),
    # so no per-tile score scaling is needed here.
    s = jax.lax.dot_general(
        q_ref[0], k_ref[0],
        dimension_numbers=(((1,), (1,)), ((), ())),  # contract Dh of both -> no K transpose
        preferred_element_type=jnp.float32,
    )                                                 # (tq, tk)
    if neg_mask is not None:
        s = s + neg_mask                              # mask pre-scaled by -1e9 in the wrapper

    m_prev = m_sc[...]
    m_new = jnp.maximum(m_prev, jnp.max(s, axis=-1, keepdims=True))
    alpha = jnp.exp(m_prev - m_new)
    p = jnp.exp(s - m_new)
    l_sc[...] = alpha * l_sc[...] + jnp.sum(p, axis=-1, keepdims=True)
    acc_sc[...] = alpha * acc_sc[...] + jnp.dot(p, v_ref[0],
                                                preferred_element_type=jnp.float32)
    m_sc[...] = m_new

    @pl.when(ki == pl.num_programs(2) - 1)
    def _():
        denom = l_sc[...]
        inv = pl.reciprocal(denom, approx=True)       # EUP slot (nearly free)
        inv = inv * (2.0 - denom * inv)               # one Newton step -> f32-accurate
        o_ref[0] = (acc_sc[...] * inv).astype(o_ref.dtype)


def _flash_attn_kernel_masked(q_ref, k_ref, v_ref, mask_ref, o_ref, m_sc, l_sc, acc_sc):
    _flash_attn_step(q_ref, k_ref, v_ref, o_ref, m_sc, l_sc, acc_sc, mask_ref[0, 0])


def _flash_attn_kernel_nomask(q_ref, k_ref, v_ref, o_ref, m_sc, l_sc, acc_sc):
    _flash_attn_step(q_ref, k_ref, v_ref, o_ref, m_sc, l_sc, acc_sc, None)


def pallas_flash_attention(q, k, v, neg_mask):
    """q: (G, Sq, Dh); k/v: (G, Sk, Dh) with G = batch*heads.
    neg_mask: (1, 1, Sq, Sk) already multiplied by -1e9, or None."""
    G, Sq, Dh = q.shape
    Sk = k.shape[1]
    tq, tk = _tile(Sq), _tile(Sk)
    if Sk > tk:
        # TODO(synk): ragged KV tails need in-kernel iota masking of the pad columns.
        assert Sk % tk == 0

    in_specs = [
        pl.BlockSpec((1, tq, Dh), lambda g, qi, ki: (g, qi, 0)),
        # TODO(synk): sweep pipeline_mode=pl.Buffered(3) on K/V for v7x.
        pl.BlockSpec((1, tk, Dh), lambda g, qi, ki: (g, ki, 0)),
        pl.BlockSpec((1, tk, Dh), lambda g, qi, ki: (g, ki, 0)),
    ]
    operands = [q, k, v]
    if neg_mask is not None:
        in_specs.append(pl.BlockSpec((1, 1, tq, tk), lambda g, qi, ki: (0, 0, qi, ki)))
        operands.append(neg_mask)
        kernel = _flash_attn_kernel_masked
    else:
        kernel = _flash_attn_kernel_nomask   # no mask DMA, no add

    return pl.pallas_call(
        kernel,
        out_shape=jax.ShapeDtypeStruct((G, Sq, Dh), jnp.float32),
        grid=(G, pl.cdiv(Sq, tq), pl.cdiv(Sk, tk)),
        in_specs=in_specs,
        out_specs=pl.BlockSpec((1, tq, Dh), lambda g, qi, ki: (g, qi, 0)),
        scratch_shapes=[
            pltpu.VMEM((tq, 1), jnp.float32),    # running max
            pltpu.VMEM((tq, 1), jnp.float32),    # running sum
            pltpu.VMEM((tq, Dh), jnp.float32),   # output accumulator
        ],
        compiler_params=pltpu.CompilerParams(
            dimension_semantics=("parallel", "parallel", "arbitrary"),
            vmem_limit_bytes=_VMEM_LIMIT,
        ),
        cost_estimate=pl.CostEstimate(
            flops=4 * G * Sq * Sk * Dh,
            transcendentals=G * Sq * Sk,
            bytes_accessed=4 * (2 * G * Sq * Dh + 2 * G * Sk * Dh + Sq * Sk),
        ),
    )(*operands)


# ---------------------------------------------------------------------------
# Parameter preparation (one-time, hoisted out of the forward hot path)
# ---------------------------------------------------------------------------
def prepare_params(params, n_heads, d_model):
    """Transpose torch (d_out, d_in) weights once, build the fused QKV weight,
    and fold the softmax 1/sqrt(d_head) scale into the Q projection."""
    d_head = d_model // n_heads
    scale = jnp.float32(1.0 / math.sqrt(d_head))
    wq_t = params["wq"].T * scale
    bq = (params["bq"] * scale).reshape(1, d_model)
    wk_t = params["wk"].T
    bk = params["bk"].reshape(1, d_model)
    wv_t = params["wv"].T
    bv = params["bv"].reshape(1, d_model)
    return {
        "wq_t": wq_t, "bq": bq,
        "wk_t": wk_t, "bk": bk,
        "wv_t": wv_t, "bv": bv,
        "w_qkv_t": jnp.concatenate([wq_t, wk_t, wv_t], axis=1),   # (d_in, 3*d_model)
        "b_qkv": jnp.concatenate([bq, bk, bv], axis=1),           # (1, 3*d_model)
        "wo_t": params["wo"].T,
        "bo": params["bo"].reshape(1, d_model),
    }


def split_proj(x, batch_size, n_heads, d_head):
    # exact replica of the PyTorch split_proj (row-major reshape + permute)
    x = jnp.reshape(x, (batch_size, -1, n_heads, d_head))
    return jnp.transpose(x, (0, 2, 1, 3))


# ---------------------------------------------------------------------------
# MultiHeadAttention forward (glue in plain JAX, hot paths in Pallas)
# ---------------------------------------------------------------------------
def mha_forward(prep, queries, keys, values, mask, n_heads, d_model):
    B, Sq, _ = queries.shape
    Sk = keys.shape[1]
    d_head = d_model // n_heads

    if (queries is keys) and (keys is values):
        # true self-attention: a single fused GEMM against the concatenated QKV weight
        qkv = pallas_matmul_bias(queries.reshape(B * Sq, -1),
                                 prep["w_qkv_t"], prep["b_qkv"])        # (N, 3*d_model)
        q_lin = qkv[:, :d_model].reshape(B, Sq, d_model)
        k_lin = qkv[:, d_model:2 * d_model].reshape(B, Sq, d_model)
        v_lin = qkv[:, 2 * d_model:].reshape(B, Sq, d_model)
    else:
        q_lin = pallas_matmul_bias(queries.reshape(B * Sq, -1),
                                   prep["wq_t"], prep["bq"]).reshape(B, Sq, d_model)
        k_lin = pallas_matmul_bias(keys.reshape(B * Sk, -1),
                                   prep["wk_t"], prep["bk"]).reshape(B, Sk, d_model)
        v_lin = pallas_matmul_bias(values.reshape(B * Sk, -1),
                                   prep["wv_t"], prep["bv"]).reshape(B, Sk, d_model)

    # NOTE: the reference module applies split_proj TWICE to queries; reproduce that quirk.
    # TODO(synk): fold this fixed (row, head) permutation into the attention Q BlockSpec
    # via scalar prefetch to save the extra HBM relayout passes.
    q_heads = split_proj(split_proj(q_lin, B, n_heads, d_head), B, n_heads, d_head)
    k_heads = split_proj(k_lin, B, n_heads, d_head)
    v_heads = split_proj(v_lin, B, n_heads, d_head)

    qf = q_heads.reshape(B * n_heads, Sq, d_head)
    kf = k_heads.reshape(B * n_heads, Sk, d_head)
    vf = v_heads.reshape(B * n_heads, Sk, d_head)

    neg_mask = None
    if mask is not None:
        neg_mask = jnp.broadcast_to(jnp.asarray(mask, jnp.float32),
                                    (1, 1, Sq, Sk)) * jnp.float32(-1e9)

    attn = pallas_flash_attention(qf, kf, vf, neg_mask)                 # (B*H, Sq, Dh)
    attn = attn.reshape(B, n_heads, Sq, d_head)
    attn = jnp.transpose(attn, (0, 2, 1, 3)).reshape(B * Sq, d_model)   # merge heads

    out = pallas_matmul_bias(attn, prep["wo_t"], prep["bo"])
    return out.reshape(B, Sq, d_model)


# ---------------------------------------------------------------------------
# Pure-JAX reference (same math as the PyTorch module) for validation
# ---------------------------------------------------------------------------
def mha_reference(params, queries, keys, values, mask, n_heads, d_model):
    B = queries.shape[0]
    d_head = d_model // n_heads
    lin = lambda x, w, b: x @ w.T + b
    q = lin(queries, params["wq"], params["bq"])
    k = lin(keys, params["wk"], params["bk"])
    v = lin(values, params["wv"], params["bv"])
    q = split_proj(q, B, n_heads, d_head)
    q = split_proj(q, B, n_heads, d_head)
    k = split_proj(k, B, n_heads, d_head)
    v = split_proj(v, B, n_heads, d_head)
    scores = jnp.einsum("bhqd,bhkd->bhqk", q, k) / jnp.sqrt(jnp.float32(d_head))
    if mask is not None:
        scores = scores + mask.astype(jnp.float32) * (-1e9)
    p = jax.nn.softmax(scores, axis=-1)
    attn = jnp.einsum("bhqk,bhkd->bhqd", p, v)
    attn = jnp.transpose(attn, (0, 2, 1, 3)).reshape(B, -1, d_model)
    return lin(attn, params["wo"], params["bo"])


# ---------------------------------------------------------------------------
if __name__ == "__main__":
    B, S, d_model, n_heads = 2, 8, 32, 4

    key = jax.random.PRNGKey(0)
    ks = jax.random.split(key, 12)
    bound = 1.0 / math.sqrt(d_model)
    u = lambda kk, shape: jax.random.uniform(kk, shape, jnp.float32, -bound, bound)

    params = {
        "wq": u(ks[0], (d_model, d_model)), "bq": u(ks[1], (d_model,)),
        "wk": u(ks[2], (d_model, d_model)), "bk": u(ks[3], (d_model,)),
        "wv": u(ks[4], (d_model, d_model)), "bv": u(ks[5], (d_model,)),
        "wo": u(ks[6], (d_model, d_model)), "bo": u(ks[7], (d_model,)),
    }
    prep = prepare_params(params, n_heads, d_model)   # one-time weight preprocessing

    queries = jax.random.normal(ks[8], (B, S, d_model), jnp.float32)
    keys_in = jax.random.normal(ks[9], (B, S, d_model), jnp.float32)
    values = jax.random.normal(ks[10], (B, S, d_model), jnp.float32)
    # causal-style mask: 1.0 where attention is disallowed
    mask = jnp.triu(jnp.ones((S, S), jnp.float32), k=1)[None, None, :, :]

    # Case 1: distinct q/k/v + mask  (3-GEMM projection path, masked kernel)
    out1 = jax.block_until_ready(
        mha_forward(prep, queries, keys_in, values, mask, n_heads, d_model))
    ref1 = mha_reference(params, queries, keys_in, values, mask, n_heads, d_model)
    assert out1.shape == (B, S, d_model)
    assert jnp.allclose(out1, ref1, atol=2e-4, rtol=2e-4), (
        f"max abs diff {jnp.max(jnp.abs(out1 - ref1))}")

    # Case 2: self-attention (same tensor), no mask  (fused QKV GEMM, unmasked kernel)
    out2 = jax.block_until_ready(
        mha_forward(prep, queries, queries, queries, None, n_heads, d_model))
    ref2 = mha_reference(params, queries, queries, queries, None, n_heads, d_model)
    assert jnp.allclose(out2, ref2, atol=2e-4, rtol=2e-4), (
        f"max abs diff {jnp.max(jnp.abs(out2 - ref2))}")

    print("KERNEL_OK")
</pallas_src>

<mosaic_0001>
module attributes {stable_mosaic.version = 11 : i64} {
  func.func @_matmul_bias_kernel(%arg0: i32, %arg1: i32, %arg2: i32, %arg3: memref<16x32xf32, #tpu.memory_space<vmem>>, %arg4: memref<32x32xf32, #tpu.memory_space<vmem>>, %arg5: memref<1x32xf32, #tpu.memory_space<vmem>>, %arg6: memref<16x32xf32, #tpu.memory_space<vmem>>, %arg7: memref<16x32xf32, #tpu.memory_space<vmem>>) attributes {dimension_semantics = [#tpu.dimension_semantics<parallel>, #tpu.dimension_semantics<parallel>, #tpu.dimension_semantics<arbitrary>], iteration_bounds = array<i64: 1, 1, 1>, scalar_prefetch = 0 : i64, scratch_operands = 1 : i64, tpu.core_type = #tpu.core_type<tc>, window_params = [{transform_indices = @transform_0, window_bounds = array<i64: 16, 32>}, {transform_indices = @transform_1, window_bounds = array<i64: 32, 32>}, {transform_indices = @transform_2, window_bounds = array<i64: 1, 32>}, {transform_indices = @transform_3, window_bounds = array<i64: 16, 32>}]} {
    %c0_i32 = arith.constant 0 : i32
    %0 = arith.cmpi eq, %arg2, %c0_i32 : i32
    %1 = arith.extui %0 : i1 to i32
    %c0_i32_0 = arith.constant 0 : i32
    %2 = arith.cmpi ne, %1, %c0_i32_0 : i32
    scf.if %2 {
      %cst_10 = arith.constant 0.000000e+00 : f32
      %12 = vector.broadcast %cst_10 : f32 to vector<16x32xf32>
      %c0_11 = arith.constant 0 : index
      %c0_12 = arith.constant 0 : index
      %13 = vector.load %arg7[%c0_11, %c0_12] : memref<16x32xf32, #tpu.memory_space<vmem>>, vector<16x32xf32>
      tpu.vector_store %arg7[%c0_11, %c0_12], %12 {strides = array<i32>} : memref<16x32xf32, #tpu.memory_space<vmem>>, vector<16x32xf32>,
    } else {
    }
    %c0 = arith.constant 0 : index
    %c0_1 = arith.constant 0 : index
    %3 = vector.load %arg7[%c0, %c0_1] : memref<16x32xf32, #tpu.memory_space<vmem>>, vector<16x32xf32>
    %c0_2 = arith.constant 0 : index
    %c0_3 = arith.constant 0 : index
    %4 = vector.load %arg3[%c0_2, %c0_3] : memref<16x32xf32, #tpu.memory_space<vmem>>, vector<16x32xf32>
    %c0_4 = arith.constant 0 : index
    %c0_5 = arith.constant 0 : index
    %5 = vector.load %arg4[%c0_4, %c0_5] : memref<32x32xf32, #tpu.memory_space<vmem>>, vector<32x32xf32>
    %cst = arith.constant dense<0.000000e+00> : vector<16x32xf32>
    %6 = tpu.matmul %4, %5, %cst {dimension_numbers = #tpu.dot_dimension_numbers<[1], [0], [0], [1], [0, 0, 1, 1], [], []>} : vector<16x32xf32>, vector<32x32xf32>, vector<16x32xf32> -> vector<16x32xf32>
    %7 = arith.addf %3, %6 : vector<16x32xf32>
    %c0_6 = arith.constant 0 : index
    %c0_7 = arith.constant 0 : index
    %8 = vector.load %arg7[%c0_6, %c0_7] : memref<16x32xf32, #tpu.memory_space<vmem>>, vector<16x32xf32>
    tpu.vector_store %arg7[%c0_6, %c0_7], %7 {strides = array<i32>} : memref<16x32xf32, #tpu.memory_space<vmem>>, vector<16x32xf32>,
    %c0_i32_8 = arith.constant 0 : i32
    %9 = arith.cmpi eq, %arg2, %c0_i32_8 : i32
    %10 = arith.extui %9 : i1 to i32
    %c0_i32_9 = arith.constant 0 : i32
    %11 = arith.cmpi ne, %10, %c0_i32_9 : i32
    scf.if %11 {
      %c0_10 = arith.constant 0 : index
      %c0_11 = arith.constant 0 : index
      %12 = vector.load %arg7[%c0_10, %c0_11] : memref<16x32xf32, #tpu.memory_space<vmem>>, vector<16x32xf32>
      %c0_12 = arith.constant 0 : index
      %c0_13 = arith.constant 0 : index
      %13 = vector.load %arg5[%c0_12, %c0_13] : memref<1x32xf32, #tpu.memory_space<vmem>>, vector<1x32xf32>
      %14 = vector.broadcast %13 : vector<1x32xf32> to vector<16x32xf32>
      %15 = arith.addf %12, %14 : vector<16x32xf32>
      %c0_14 = arith.constant 0 : index
      %c0_15 = arith.constant 0 : index
      %16 = vector.load %arg6[%c0_14, %c0_15] : memref<16x32xf32, #tpu.memory_space<vmem>>, vector<16x32xf32>
      tpu.vector_store %arg6[%c0_14, %c0_15], %15 {strides = array<i32>} : memref<16x32xf32, #tpu.memory_space<vmem>>, vector<16x32xf32>,
    } else {
    }
    return
  }
  func.func @transform_0(%arg0: i32, %arg1: i32, %arg2: i32) -> (i32, i32) {
    %c0_i32 = arith.constant 0 : i32
    return %arg0, %arg2 : i32, i32
  }
  func.func @transform_1(%arg0: i32, %arg1: i32, %arg2: i32) -> (i32, i32) {
    %c0_i32 = arith.constant 0 : i32
    return %arg2, %arg1 : i32, i32
  }
  func.func @transform_2(%arg0: i32, %arg1: i32, %arg2: i32) -> (i32, i32) {
    %c0_i32 = arith.constant 0 : i32
    %c0_i32_0 = arith.constant 0 : i32
    return %c0_i32, %arg1 : i32, i32
  }
  func.func @transform_3(%arg0: i32, %arg1: i32, %arg2: i32) -> (i32, i32) {
    %c0_i32 = arith.constant 0 : i32
    return %arg0, %arg1 : i32, i32
  }
}

</mosaic_0001>

<llo_original>
// kernel: tpu_custom_call.1
$region0: #{tpu_custom_call.1}
  #allocation0 [shape = 'u32[]', space=smem, size = 0x4, offset = 0x4, fixed_abs, tag = 'smem constant byte address 0x4 - core index']
  #allocation1 [shape = 'u32[144,128]{1,0:T(1,128)}', space=vmem, size = 0x12000, scoped, tag = 'internal scratch']
  #allocation2 [shape = 'f32[16,32]{1,0:T(8,128)}', space=vmem, size = 0x2000, scoped, tag = 'scratch operand']
  %s0 = inlined_call_operand.hbm [shape: f32[16,32], index: 0, kind: input, shape index: {}]
  %s1 = inlined_call_operand.hbm [shape: f32[32,32], index: 1, kind: input, shape index: {}]
  %s2 = inlined_call_operand.vmem [shape: f32[1,32], index: 2, kind: input, shape index: {}]
  %s3 = inlined_call_operand.hbm [shape: f32[16,32], index: 3, kind: output, shape index: {}]
  %s4 = sld [smem:[#allocation0]]
  $region38: #{tpu_custom_call.1} parent=0
    _
  %s6 = ssub.s32 1, %s4
  %s7 = scalar_select 0, %s6, %s4
  $region1: #{tpu_custom_call.1} parent=0
    #allocation3 [shape = 'u8[8192]{0}', space=vmem, size = 0x2000, scoped, tag = 'input window, operand 0, single buffered']
    #allocation4 [shape = 's32[1]{0}', space=sflag, size = 0x4, scoped, tag = 'scoped memory for tpu_custom_call.1']
    #allocation5 [shape = 's32[1]{0}', space=sflag, size = 0x4, scoped, tag = 'scoped memory for tpu_custom_call.1']
    #allocation6 [shape = 'u8[16384]{0}', space=vmem, size = 0x4000, scoped, tag = 'input window, operand 1, single buffered']
    #allocation7 [shape = 's32[1]{0}', space=sflag, size = 0x4, scoped, tag = 'scoped memory for tpu_custom_call.1']
    #allocation8 [shape = 'u8[8192]{0}', space=vmem, size = 0x2000, scoped, tag = 'output window, operand 0, single buffered']
    %8 = vsyncpa [#allocation4], 0
    %9 = vsyncpa [#allocation7], 0
    %10 = vsyncpa [#allocation5], 0
    // Predicated region
    $region2: #{tpu_custom_call.1} parent=1 // pred_check
      _
    $region3: #{tpu_custom_call.1} parent=1 // pred_check_branch
      %12 = sbr.rel (0) target = $region5
    $region4: #{tpu_custom_call.1} parent=1 // pred_region
      %s14 = ssub.s32 256, 256
      %15 = vsyncadd [#allocation4], %s14
      %s16 = sshll.u32 [#allocation3], 4
      %s17 = int_to_ptr.vmem [resolvable:$true] %s16
      %22 = dma.hbm_to_vmem [thread:$0]  %s0, 256, %s17, [#allocation4], 128, 128, 8
    $region5: #{tpu_custom_call.1} parent=1 // pred_fallthru
      _
    // Predicated region
    $region6: #{tpu_custom_call.1} parent=1 // pred_check
      _
    $region7: #{tpu_custom_call.1} parent=1 // pred_check_branch
      %24 = sbr.rel (0) target = $region9
    $region8: #{tpu_custom_call.1} parent=1 // pred_region
      %s26 = ssub.s32 512, 512
      %27 = vsyncadd [#allocation7], %s26
      %s28 = sshll.u32 [#allocation6], 4
      %s29 = int_to_ptr.vmem [resolvable:$true] %s28
      %34 = dma.hbm_to_vmem [thread:$0]  %s1, 512, %s29, [#allocation7], 128, 128, 8
    $region9: #{tpu_custom_call.1} parent=1 // pred_fallthru
      _
    // Predicated region
    $region10: #{tpu_custom_call.1} parent=1 // pred_check
      _
    $region11: #{tpu_custom_call.1} parent=1 // pred_check_branch
      %36 = sbr.rel (0) target = $region13
    $region12: #{tpu_custom_call.1} parent=1 // pred_region
      _
    $region13: #{tpu_custom_call.1} parent=1 // pred_fallthru
      _
    // Predicated region
    $region14: #{tpu_custom_call.1} parent=1 // pred_check
      _
    $region15: #{tpu_custom_call.1} parent=1 // pred_check_branch
      %38 = sbr.rel (0) target = $region17
    $region16: #{tpu_custom_call.1} parent=1 // pred_region
      %39 = dma.done [#allocation4], 256
    $region17: #{tpu_custom_call.1} parent=1 // pred_fallthru
      _
    // Predicated region
    $region18: #{tpu_custom_call.1} parent=1 // pred_check
      _
    $region19: #{tpu_custom_call.1} parent=1 // pred_check_branch
      %41 = sbr.rel (0) target = $region21
    $region20: #{tpu_custom_call.1} parent=1 // pred_region
      %42 = dma.done [#allocation7], 512
    $region21: #{tpu_custom_call.1} parent=1 // pred_fallthru
      _
    %p43 = scmp.eq.s32.totalorder 0, 0
    // Predicated region
    $region22: #{tpu_custom_call.1} parent=1 // pred_check
      %p44 = pneg %p43
    $region23: #{tpu_custom_call.1} parent=1 // pred_check_branch
      %46 = sbr.rel (%p44) target = $region25
    $region24: #{tpu_custom_call.1} parent=1 // pred_region
      %vm47 = vcmask 261120
      %48 = vst.msk [vmem:[#allocation2] sm:$0xff] %vm47, 0.0
      %49 = vst.msk [vmem:[#allocation2 + $0x8] sm:$0xff] %vm47, 0.0
    $region25: #{tpu_custom_call.1} parent=1 // pred_fallthru
      _
    %v50 = vld [vmem:[#allocation2] sm:$0xff]
    %v51 = vld [vmem:[#allocation2 + $0x8] sm:$0xff]
    %v52 = vld [vmem:[#allocation3] sm:$0xff]
    %v53 = vld [vmem:[#allocation3 + $0x8] sm:$0xff]
    %v54 = vld [vmem:[#allocation6] sm:$0xff]
    %v55 = vld [vmem:[#allocation6 + $0x8] sm:$0xff]
    %v56 = vld [vmem:[#allocation6 + $0x10] sm:$0xff]
    %v57 = vld [vmem:[#allocation6 + $0x18] sm:$0xff]
    %vm58 = vcmask 261120
    %v60 = vsel %vm58, %v52, 0
    %v63 = vsel %vm58, %v53, 0
    %65 = vmatprep.subr.mxu0 0.0
    %66 = vmatpush1.msra.mxu0 %v54
    %67 = vmatprep.subr.mxu0 0.0
    %68 = vmatpush1.msra.mxu0 %v55
    %69 = vmatprep.subr.mxu0 0.0
    %70 = vmatpush1.msra.mxu0 %v56
    %71 = vmatprep.subr.mxu0 0.0
    %72 = vmatpush1.msra.mxu0 %v57
    %73 = vmatprep.subr.mxu0 0.0
    %74 = vmatpush1.msra.mxu0 0.0
    %75 = vmatprep.subr.mxu0 0.0
    %76 = vmatpush1.msra.mxu0 0.0
    %77 = vmatprep.subr.mxu0 0.0
    %78 = vmatpush1.msra.mxu0 0.0
    %79 = vmatprep.subr.mxu0 0.0
    %80 = vmatpush1.msra.mxu0 0.0
    %81 = vmatprep.subr.mxu0 0.0
    %82 = vmatpush1.msra.mxu0 0.0
    %83 = vmatprep.subr.mxu0 0.0
    %84 = vmatpush1.msra.mxu0 0.0
    %85 = vmatprep.subr.mxu0 0.0
    %86 = vmatpush1.msra.mxu0 0.0
    %87 = vmatprep.subr.mxu0 0.0
    %88 = vmatpush1.msra.mxu0 0.0
    %89 = vmatprep.subr.mxu0 0.0
    %90 = vmatpush1.msra.mxu0 0.0
    %91 = vmatprep.subr.mxu0 0.0
    %92 = vmatpush1.msra.mxu0 0.0
    %93 = vmatprep.subr.mxu0 0.0
    %94 = vmatpush1.msra.mxu0 0.0
    %95 = vmatprep.subr.mxu0 0.0
    %96 = vmatpush1.msra.mxu0 0.0
    %97 = vmatprep.subr.mxu0 0.0
    %98 = vmatpush1.msra.mxu0 0.0
    %99 = vmatprep.subr.mxu0 0.0
    %100 = vmatpush1.msra.mxu0 0.0
    %101 = vmatprep.subr.mxu0 0.0
    %102 = vmatpush1.msra.mxu0 0.0
    %103 = vmatprep.subr.mxu0 0.0
    %104 = vmatpush1.msra.mxu0 0.0
    %105 = vmatprep.subr.mxu0 0.0
    %106 = vmatpush1.msra.mxu0 0.0
    %107 = vmatprep.subr.mxu0 0.0
    %108 = vmatpush1.msra.mxu0 0.0
    %109 = vmatprep.subr.mxu0 0.0
    %110 = vmatpush1.msra.mxu0 0.0
    %111 = vmatprep.subr.mxu0 0.0
    %112 = vmatpush1.msra.mxu0 0.0
    %113 = vmatprep.subr.mxu0 0.0
    %114 = vmatpush1.msra.mxu0 0.0
    %115 = vmatprep.subr.mxu0 0.0
    %116 = vmatpush1.msra.mxu0 0.0
    %117 = vmatprep.subr.mxu0 0.0
    %118 = vmatpush1.msra.mxu0 0.0
    %119 = vmatprep.subr.mxu0 0.0
    %120 = vmatpush1.msra.mxu0 0.0
    %121 = vmatprep.subr.mxu0 0.0
    %122 = vmatpush1.msra.mxu0 0.0
    %123 = vmatprep.subr.mxu0 0.0
    %124 = vmatpush1.msra.mxu0 0.0
    %125 = vmatprep.subr.mxu0 0.0
    %126 = vmatpush1.msra.mxu0 0.0
    %127 = vmatprep.subr.mxu0 0.0
    %128 = vmatpush1.msra.mxu0 0.0
    %129 = vmatprep.mubr.f32.mxu0 0.0
    %130 = vmatmul.mubr.f32.gmra.mrb[0].mxu0 %v60
    %v131 = vpop.f32.mrb[0].mxu0
    %v132 = vadd.f32 0.0, %v131
    %v133 = vpop.f32.mrb[0].mxu0
    %134 = vmatprep.mubr.f32.mxu0 0.0
    %135 = vmatmul.mubr.f32.gmra.mrb[0].mxu0 %v63
    %v136 = vpop.f32.mrb[0].mxu0
    %v137 = vadd.f32 0.0, %v136
    %v138 = vpop.f32.mrb[0].mxu0
    %139 = vdwg.mxu0
    %v140 = vadd.f32 %v50, %v132
    %v141 = vadd.f32 %v51, %v137
    %142 = vst.msk [vmem:[#allocation2] sm:$0xff] %vm58, %v140
    %143 = vst.msk [vmem:[#allocation2 + $0x8] sm:$0xff] %vm58, %v141
    // Predicated region
    $region26: #{tpu_custom_call.1} parent=1 // pred_check
      %p144 = pneg %p43
    $region27: #{tpu_custom_call.1} parent=1 // pred_check_branch
      %146 = sbr.rel (%p144) target = $region29
    $region28: #{tpu_custom_call.1} parent=1 // pred_region
      %v147 = vld [vmem:[#allocation2] sm:$0xff]
      %v148 = vld [vmem:[#allocation2 + $0x8] sm:$0xff]
      %v149 = vld [vmem:[%s2] sm:$0x1]
      %v151 = vlaneseq
      %v152 = vshrl.u32 %v151, 7
      %v153 = vsub.s32 0, %v152
      %v154 = vrot.slane %v149, %v153
      %v156 = vadd.f32 %v147, %v154
      %v157 = vadd.f32 %v148, %v154
      %158 = vst.msk [vmem:[#allocation8] sm:$0xff] %vm58, %v156
      %159 = vst.msk [vmem:[#allocation8 + $0x8] sm:$0xff] %vm58, %v157
    $region29: #{tpu_custom_call.1} parent=1 // pred_fallthru
      _
    // Predicated region
    $region30: #{tpu_custom_call.1} parent=1 // pred_check
      _
    $region31: #{tpu_custom_call.1} parent=1 // pred_check_branch
      %161 = sbr.rel (0) target = $region33
    $region32: #{tpu_custom_call.1} parent=1 // pred_region
      %s163 = ssub.s32 256, 256
      %164 = vsyncadd [#allocation5], %s163
      %s165 = sshll.u32 [#allocation8], 4
      %s166 = int_to_ptr.vmem [resolvable:$true] %s165
      %171 = dma.vmem_to_hbm [thread:$0]  %s166, 256, %s3, [#allocation5], 128, 128, 8
    $region33: #{tpu_custom_call.1} parent=1 // pred_fallthru
      _
    // Predicated region
    $region34: #{tpu_custom_call.1} parent=1 // pred_check
      _
    $region35: #{tpu_custom_call.1} parent=1 // pred_check_branch
      %173 = sbr.rel (0) target = $region37
    $region36: #{tpu_custom_call.1} parent=1 // pred_region
      %174 = dma.done [#allocation5], 256
    $region37: #{tpu_custom_call.1} parent=1 // pred_fallthru
      _
    %175 = vsyncpa [#allocation4], 1
    %176 = vsyncpa [#allocation7], 1
    %177 = vsyncpa [#allocation5], 1

</llo_original>
